<compile_context>
chip_gen: v6e
topology: v6e:2x2x1
jax: 0.10.0
libtpu: 0.0.40
codegen_flags: <defaults>
</compile_context>

<pallas_src>
import jax
import jax.numpy as jnp
from jax.experimental import pallas as pl
from jax.experimental.pallas import tpu as pltpu


def _patch_embed_kernel(xm_ref, xh_ref, w_ref, b_ref, o_ref, xwin_ref, acc_ref):
    # xm_ref  : (1, TH,  Wo+1, K)   main space-to-depth rows of this output-row tile
    # xh_ref  : (1, 1,   Wo+1, K)   halo row (first s2d row of the next tile)
    # w_ref   : (4, K, Cout)        2x2 tap weights, K = P*P*Cin
    # b_ref   : (1, Cout)           bias (zeros if module has bias=False)
    # o_ref   : (1, Cout, TH*Wo)    channel-major output tile (lane-dense last dim)
    # xwin_ref: VMEM (TH+1, Wo+1, K) scratch window (main rows + halo row)
    # acc_ref : VMEM (TH*Wo, Cout)  f32 accumulator
    TH = xm_ref.shape[1]
    Wo = xm_ref.shape[2] - 1
    K = xm_ref.shape[3]
    M = TH * Wo

    # Assemble the (TH+1)-row window in VMEM.
    xwin_ref[pl.ds(0, TH)] = xm_ref[0]
    xwin_ref[pl.ds(TH, 1)] = xh_ref[0]

    # 2x2 "conv" over the space-to-depth tensor == original (P+2V)^2 stride-P conv.
    for idx, (p, q) in enumerate(((0, 0), (0, 1), (1, 0), (1, 1))):
        tap = xwin_ref[pl.ds(p, TH), pl.ds(q, Wo), :].reshape(M, K)
        contrib = jnp.dot(tap, w_ref[idx], preferred_element_type=jnp.float32)
        if idx == 0:
            acc_ref[...] = contrib
        else:
            acc_ref[...] += contrib

    res = acc_ref[...] + b_ref[...]          # (M, Cout) + (1, Cout)
    # Channel-major (NCHW-flat) store; wrapper reshape to (Cout, Ho, Wo) is free.
    o_ref[0] = res.T.astype(o_ref.dtype)


def _choose_row_tile(Ho, Wo, K, itemsize, budget_bytes=8 * 1024 * 1024):
    """Pick TH | Ho so the per-tile input block stays under `budget_bytes` and the
    flat output tile (TH*Wo) stays either full or a multiple of 128 lanes."""
    def in_block_bytes(th):
        return (th + 1) * (Wo + 1) * K * itemsize

    if in_block_bytes(Ho) <= budget_bytes:
        return Ho
    for th in range(Ho - 1, 0, -1):
        if Ho % th == 0 and (th * Wo) % 128 == 0 and in_block_bytes(th) <= budget_bytes:
            return th
    return Ho


def _patch_embed_conv(x_nchw, weight_oihw, bias, patch_size, overlap_size):
    """Conv2d(C->Cout, k=P+2V, stride=P, pad=V) on (N, C, H, W) -> (N, Cout, H/P, W/P)."""
    N, C, H, W = x_nchw.shape
    Cout, Cin, Kh, Kw = weight_oihw.shape
    P, V = patch_size, overlap_size
    assert Cin == C and Kh == P + 2 * V and Kw == Kh
    assert H % P == 0 and W % P == 0 and 0 < 2 * V <= P
    Ho, Wo = H // P, W // P
    K = P * P * C

    # --- single fused pre-pass: zero-pad + space-to-depth(P): (N,C,H,W) -> (N,Ho+1,Wo+1,K)
    xp = jnp.pad(x_nchw, ((0, 0), (0, 0), (V, P - V), (V, P - V)))
    xsd = xp.reshape(N, C, Ho + 1, P, Wo + 1, P)
    xsd = jnp.transpose(xsd, (0, 2, 4, 3, 5, 1))          # (N, Hb, Wb, a, b, C)
    xsd = xsd.reshape(N, Ho + 1, Wo + 1, K)

    # --- weight: (Cout, C, Kh, Kw) -> 4 taps of (K, Cout); taps zero-padded to 2P x 2P
    w_t = jnp.transpose(weight_oihw, (2, 3, 1, 0))        # (Kh, Kw, C, Cout)
    w_full = jnp.zeros((2 * P, 2 * P, C, Cout), w_t.dtype).at[:Kh, :Kw].set(w_t)
    w_s2d = w_full.reshape(2, P, 2, P, C, Cout)           # (p, a, q, b, C, Cout)
    w_s2d = jnp.transpose(w_s2d, (0, 2, 1, 3, 4, 5)).reshape(4, K, Cout)

    if bias is None:
        b2d = jnp.zeros((1, Cout), x_nchw.dtype)
    else:
        b2d = bias.reshape(1, Cout).astype(x_nchw.dtype)

    TH = _choose_row_tile(Ho, Wo, K, jnp.dtype(x_nchw.dtype).itemsize)
    n_row_tiles = Ho // TH
    M = TH * Wo

    out_flat = pl.pallas_call(
        _patch_embed_kernel,
        out_shape=jax.ShapeDtypeStruct((N, Cout, Ho * Wo), x_nchw.dtype),
        grid_spec=pltpu.PrefetchScalarGridSpec(
            num_scalar_prefetch=0,
            grid=(N, n_row_tiles),
            in_specs=[
                # main rows of this output-row tile
                pl.BlockSpec((1, TH, Wo + 1, K), lambda n, t: (n, t, 0, 0)),
                # single halo row (block size 1 -> block index == row index)
                pl.BlockSpec((1, 1, Wo + 1, K), lambda n, t: (n, (t + 1) * TH, 0, 0)),
                pl.BlockSpec((4, K, Cout), lambda n, t: (0, 0, 0)),
                pl.BlockSpec((1, Cout), lambda n, t: (0, 0)),
            ],
            out_specs=pl.BlockSpec((1, Cout, M), lambda n, t: (n, 0, t)),
            scratch_shapes=[
                pltpu.VMEM((TH + 1, Wo + 1, K), x_nchw.dtype),
                pltpu.VMEM((M, Cout), jnp.float32),
            ],
        ),
        compiler_params=pltpu.CompilerParams(
            dimension_semantics=("parallel", "parallel"),
            vmem_limit_bytes=32 * 1024 * 1024),
    )(xsd, xsd, w_s2d, b2d)

    return out_flat.reshape(N, Cout, Ho, Wo)


def overlap_patch_embed_forward(x, weight, bias=None, patch_size=4, overlap_size=1,
                                periodic_width=False, periodic_height=False):
    """OverlapPatchEmbed.forward: (B, G, C, H, W) -> (B, G, embed_dim, H/P, W/P)."""
    B, G, C, H, W = x.shape
    Cout = weight.shape[0]
    P = patch_size

    xf = x.reshape(B * G, C, H, W)
    if periodic_width:
        xf = jnp.concatenate([xf[:, :, :, -P:], xf, xf[:, :, :, :P]], axis=-1)
    if periodic_height:
        xf = jnp.concatenate([xf[:, :, -P:, :], xf, xf[:, :, :P, :]], axis=-2)

    conv = _patch_embed_conv(xf, weight, bias, P, overlap_size)   # (N, Cout, Ho, Wo)

    if periodic_width:
        conv = conv[:, :, :, 1:-1]
    if periodic_height:
        conv = conv[:, :, 1:-1, :]
    return conv.reshape(B, G, Cout, conv.shape[2], conv.shape[3])


def _reference(x, weight, bias=None, patch_size=4, overlap_size=1):
    """Pure-JAX reference (lax conv, HIGHEST precision) of the same forward pass."""
    B, G, C, H, W = x.shape
    Cout = weight.shape[0]
    xf = x.reshape(B * G, C, H, W)
    conv = jax.lax.conv_general_dilated(
        xf, weight, window_strides=(patch_size, patch_size),
        padding=[(overlap_size, overlap_size), (overlap_size, overlap_size)],
        dimension_numbers=("NCHW", "OIHW", "NCHW"),
        precision=jax.lax.Precision.HIGHEST)
    if bias is not None:
        conv = conv + bias[None, :, None, None]
    return conv.reshape(B, G, Cout, conv.shape[2], conv.shape[3])


if __name__ == "__main__":
    key = jax.random.PRNGKey(0)
    kx, kw = jax.random.split(key)

    # Module defaults: in_c=3, embed_dim=48, patch_size=4, overlap_size=1, bias=False.
    B, G, in_c, H, W = 2, 2, 3, 16, 16
    embed_dim, patch_size, overlap_size = 48, 4, 1
    ksz = patch_size + 2 * overlap_size

    x = jax.random.normal(kx, (B, G, in_c, H, W), dtype=jnp.float32)
    weight = jax.random.normal(kw, (embed_dim, in_c, ksz, ksz), dtype=jnp.float32) * 0.1

    out = overlap_patch_embed_forward(x, weight, bias=None,
                                      patch_size=patch_size, overlap_size=overlap_size)
    out = jax.block_until_ready(out)

    ref = jax.block_until_ready(_reference(x, weight, None, patch_size, overlap_size))
    assert out.shape == (B, G, embed_dim, H // patch_size, W // patch_size), out.shape
    assert jnp.allclose(out, ref, atol=1e-3, rtol=1e-3)

    print("KERNEL_OK")
</pallas_src>

<mosaic_0001>
module attributes {stable_mosaic.version = 11 : i64} {
  func.func @_patch_embed_kernel(%arg0: i32, %arg1: i32, %arg2: memref<1x4x5x48xf32, #tpu.memory_space<vmem>>, %arg3: memref<1x1x5x48xf32, #tpu.memory_space<vmem>>, %arg4: memref<4x48x48xf32, #tpu.memory_space<vmem>>, %arg5: memref<1x48xf32, #tpu.memory_space<vmem>>, %arg6: memref<1x48x16xf32, #tpu.memory_space<vmem>>, %arg7: memref<5x5x48xf32, #tpu.memory_space<vmem>>, %arg8: memref<16x48xf32, #tpu.memory_space<vmem>>) attributes {dimension_semantics = [#tpu.dimension_semantics<parallel>, #tpu.dimension_semantics<parallel>], iteration_bounds = array<i64: 4, 1>, scalar_prefetch = 0 : i64, scratch_operands = 2 : i64, tpu.core_type = #tpu.core_type<tc>, window_params = [{transform_indices = @transform_0, window_bounds = array<i64: 1, 4, 5, 48>}, {transform_indices = @transform_1, window_bounds = array<i64: 1, 1, 5, 48>}, {pipeline_mode = #tpu.pipeline_mode<synchronous>, transform_indices = @transform_2, window_bounds = array<i64: 4, 48, 48>}, {pipeline_mode = #tpu.pipeline_mode<synchronous>, transform_indices = @transform_3, window_bounds = array<i64: 1, 48>}, {transform_indices = @transform_4, window_bounds = array<i64: 1, 48, 16>}]} {
    %c0 = arith.constant 0 : index
    %c0_0 = arith.constant 0 : index
    %c0_1 = arith.constant 0 : index
    %c0_2 = arith.constant 0 : index
    %0 = vector.load %arg2[%c0, %c0_0, %c0_1, %c0_2] : memref<1x4x5x48xf32, #tpu.memory_space<vmem>>, vector<1x4x5x48xf32>
    %1 = vector.shape_cast %0 : vector<1x4x5x48xf32> to vector<4x5x48xf32>
    %c0_3 = arith.constant 0 : index
    %c0_4 = arith.constant 0 : index
    %c0_5 = arith.constant 0 : index
    %2 = vector.load %arg7[%c0_3, %c0_4, %c0_5] : memref<5x5x48xf32, #tpu.memory_space<vmem>>, vector<4x5x48xf32>
    tpu.vector_store %arg7[%c0_3, %c0_4, %c0_5], %1 {strides = array<i32>} : memref<5x5x48xf32, #tpu.memory_space<vmem>>, vector<4x5x48xf32>,
    %c0_6 = arith.constant 0 : index
    %c0_7 = arith.constant 0 : index
    %c0_8 = arith.constant 0 : index
    %c0_9 = arith.constant 0 : index
    %3 = vector.load %arg3[%c0_6, %c0_7, %c0_8, %c0_9] : memref<1x1x5x48xf32, #tpu.memory_space<vmem>>, vector<1x1x5x48xf32>
    %4 = vector.shape_cast %3 : vector<1x1x5x48xf32> to vector<1x5x48xf32>
    %c4 = arith.constant 4 : index
    %c0_10 = arith.constant 0 : index
    %c0_11 = arith.constant 0 : index
    %5 = vector.load %arg7[%c4, %c0_10, %c0_11] : memref<5x5x48xf32, #tpu.memory_space<vmem>>, vector<1x5x48xf32>
    tpu.vector_store %arg7[%c4, %c0_10, %c0_11], %4 {strides = array<i32>} : memref<5x5x48xf32, #tpu.memory_space<vmem>>, vector<1x5x48xf32>,
    %c0_12 = arith.constant 0 : index
    %c0_13 = arith.constant 0 : index
    %c0_14 = arith.constant 0 : index
    %6 = vector.load %arg7[%c0_12, %c0_13, %c0_14] : memref<5x5x48xf32, #tpu.memory_space<vmem>>, vector<4x4x48xf32>
    %7 = vector.shape_cast %6 : vector<4x4x48xf32> to vector<16x48xf32>
    %c0_15 = arith.constant 0 : index
    %c0_16 = arith.constant 0 : index
    %c0_17 = arith.constant 0 : index
    %8 = vector.load %arg4[%c0_15, %c0_16, %c0_17] : memref<4x48x48xf32, #tpu.memory_space<vmem>>, vector<1x48x48xf32>
    %9 = vector.shape_cast %8 : vector<1x48x48xf32> to vector<48x48xf32>
    %cst = arith.constant dense<0.000000e+00> : vector<16x48xf32>
    %10 = tpu.matmul %7, %9, %cst {dimension_numbers = #tpu.dot_dimension_numbers<[1], [0], [0], [1], [0, 0, 1, 1], [], []>} : vector<16x48xf32>, vector<48x48xf32>, vector<16x48xf32> -> vector<16x48xf32>
    %c0_18 = arith.constant 0 : index
    %c0_19 = arith.constant 0 : index
    %11 = vector.load %arg8[%c0_18, %c0_19] : memref<16x48xf32, #tpu.memory_space<vmem>>, vector<16x48xf32>
    tpu.vector_store %arg8[%c0_18, %c0_19], %10 {strides = array<i32>} : memref<16x48xf32, #tpu.memory_space<vmem>>, vector<16x48xf32>,
    %c0_20 = arith.constant 0 : index
    %c1 = arith.constant 1 : index
    %c0_21 = arith.constant 0 : index
    %12 = vector.load %arg7[%c0_20, %c1, %c0_21] : memref<5x5x48xf32, #tpu.memory_space<vmem>>, vector<4x4x48xf32>
    %13 = vector.shape_cast %12 : vector<4x4x48xf32> to vector<16x48xf32>
    %c1_22 = arith.constant 1 : index
    %c0_23 = arith.constant 0 : index
    %c0_24 = arith.constant 0 : index
    %14 = vector.load %arg4[%c1_22, %c0_23, %c0_24] : memref<4x48x48xf32, #tpu.memory_space<vmem>>, vector<1x48x48xf32>
    %15 = vector.shape_cast %14 : vector<1x48x48xf32> to vector<48x48xf32>
    %cst_25 = arith.constant dense<0.000000e+00> : vector<16x48xf32>
    %16 = tpu.matmul %13, %15, %cst_25 {dimension_numbers = #tpu.dot_dimension_numbers<[1], [0], [0], [1], [0, 0, 1, 1], [], []>} : vector<16x48xf32>, vector<48x48xf32>, vector<16x48xf32> -> vector<16x48xf32>
    %c0_26 = arith.constant 0 : index
    %c0_27 = arith.constant 0 : index
    %17 = vector.load %arg8[%c0_26, %c0_27] : memref<16x48xf32, #tpu.memory_space<vmem>>, vector<16x48xf32>
    %18 = arith.addf %17, %16 : vector<16x48xf32>
    %c0_28 = arith.constant 0 : index
    %c0_29 = arith.constant 0 : index
    %19 = vector.load %arg8[%c0_28, %c0_29] : memref<16x48xf32, #tpu.memory_space<vmem>>, vector<16x48xf32>
    tpu.vector_store %arg8[%c0_28, %c0_29], %18 {strides = array<i32>} : memref<16x48xf32, #tpu.memory_space<vmem>>, vector<16x48xf32>,
    %c1_30 = arith.constant 1 : index
    %c0_31 = arith.constant 0 : index
    %c0_32 = arith.constant 0 : index
    %20 = vector.load %arg7[%c1_30, %c0_31, %c0_32] : memref<5x5x48xf32, #tpu.memory_space<vmem>>, vector<4x4x48xf32>
    %21 = vector.shape_cast %20 : vector<4x4x48xf32> to vector<16x48xf32>
    %c2 = arith.constant 2 : index
    %c0_33 = arith.constant 0 : index
    %c0_34 = arith.constant 0 : index
    %22 = vector.load %arg4[%c2, %c0_33, %c0_34] : memref<4x48x48xf32, #tpu.memory_space<vmem>>, vector<1x48x48xf32>
    %23 = vector.shape_cast %22 : vector<1x48x48xf32> to vector<48x48xf32>
    %cst_35 = arith.constant dense<0.000000e+00> : vector<16x48xf32>
    %24 = tpu.matmul %21, %23, %cst_35 {dimension_numbers = #tpu.dot_dimension_numbers<[1], [0], [0], [1], [0, 0, 1, 1], [], []>} : vector<16x48xf32>, vector<48x48xf32>, vector<16x48xf32> -> vector<16x48xf32>
    %c0_36 = arith.constant 0 : index
    %c0_37 = arith.constant 0 : index
    %25 = vector.load %arg8[%c0_36, %c0_37] : memref<16x48xf32, #tpu.memory_space<vmem>>, vector<16x48xf32>
    %26 = arith.addf %25, %24 : vector<16x48xf32>
    %c0_38 = arith.constant 0 : index
    %c0_39 = arith.constant 0 : index
    %27 = vector.load %arg8[%c0_38, %c0_39] : memref<16x48xf32, #tpu.memory_space<vmem>>, vector<16x48xf32>
    tpu.vector_store %arg8[%c0_38, %c0_39], %26 {strides = array<i32>} : memref<16x48xf32, #tpu.memory_space<vmem>>, vector<16x48xf32>,
    %c1_40 = arith.constant 1 : index
    %c1_41 = arith.constant 1 : index
    %c0_42 = arith.constant 0 : index
    %28 = vector.load %arg7[%c1_40, %c1_41, %c0_42] : memref<5x5x48xf32, #tpu.memory_space<vmem>>, vector<4x4x48xf32>
    %29 = vector.shape_cast %28 : vector<4x4x48xf32> to vector<16x48xf32>
    %c3 = arith.constant 3 : index
    %c0_43 = arith.constant 0 : index
    %c0_44 = arith.constant 0 : index
    %30 = vector.load %arg4[%c3, %c0_43, %c0_44] : memref<4x48x48xf32, #tpu.memory_space<vmem>>, vector<1x48x48xf32>
    %31 = vector.shape_cast %30 : vector<1x48x48xf32> to vector<48x48xf32>
    %cst_45 = arith.constant dense<0.000000e+00> : vector<16x48xf32>
    %32 = tpu.matmul %29, %31, %cst_45 {dimension_numbers = #tpu.dot_dimension_numbers<[1], [0], [0], [1], [0, 0, 1, 1], [], []>} : vector<16x48xf32>, vector<48x48xf32>, vector<16x48xf32> -> vector<16x48xf32>
    %c0_46 = arith.constant 0 : index
    %c0_47 = arith.constant 0 : index
    %33 = vector.load %arg8[%c0_46, %c0_47] : memref<16x48xf32, #tpu.memory_space<vmem>>, vector<16x48xf32>
    %34 = arith.addf %33, %32 : vector<16x48xf32>
    %c0_48 = arith.constant 0 : index
    %c0_49 = arith.constant 0 : index
    %35 = vector.load %arg8[%c0_48, %c0_49] : memref<16x48xf32, #tpu.memory_space<vmem>>, vector<16x48xf32>
    tpu.vector_store %arg8[%c0_48, %c0_49], %34 {strides = array<i32>} : memref<16x48xf32, #tpu.memory_space<vmem>>, vector<16x48xf32>,
    %c0_50 = arith.constant 0 : index
    %c0_51 = arith.constant 0 : index
    %36 = vector.load %arg8[%c0_50, %c0_51] : memref<16x48xf32, #tpu.memory_space<vmem>>, vector<16x48xf32>
    %c0_52 = arith.constant 0 : index
    %c0_53 = arith.constant 0 : index
    %37 = vector.load %arg5[%c0_52, %c0_53] : memref<1x48xf32, #tpu.memory_space<vmem>>, vector<1x48xf32>
    %38 = vector.broadcast %37 : vector<1x48xf32> to vector<16x48xf32>
    %39 = arith.addf %36, %38 : vector<16x48xf32>
    %40 = tpu.transpose %39, [1, 0] : vector<16x48xf32> -> vector<48x16xf32>
    %c0_54 = arith.constant 0 : index
    %c0_55 = arith.constant 0 : index
    %c0_56 = arith.constant 0 : index
    %41 = vector.load %arg6[%c0_54, %c0_55, %c0_56] : memref<1x48x16xf32, #tpu.memory_space<vmem>>, vector<1x48x16xf32>
    %42 = vector.shape_cast %41 : vector<1x48x16xf32> to vector<48x16xf32>
    %43 = vector.shape_cast %40 : vector<48x16xf32> to vector<1x48x16xf32>
    tpu.vector_store %arg6[%c0_54, %c0_55, %c0_56], %43 {strides = array<i32>} : memref<1x48x16xf32, #tpu.memory_space<vmem>>, vector<1x48x16xf32>,
    return
  }
  func.func @transform_0(%arg0: i32, %arg1: i32) -> (i32, i32, i32, i32) {
    %c0_i32 = arith.constant 0 : i32
    %c0_i32_0 = arith.constant 0 : i32
    %c0_i32_1 = arith.constant 0 : i32
    return %arg0, %arg1, %c0_i32, %c0_i32_0 : i32, i32, i32, i32
  }
  func.func @transform_1(%arg0: i32, %arg1: i32) -> (i32, i32, i32, i32) {
    %c1_i32 = arith.constant 1 : i32
    %0 = arith.addi %arg1, %c1_i32 : i32
    %c4_i32 = arith.constant 4 : i32
    %1 = arith.muli %0, %c4_i32 : i32
    %c0_i32 = arith.constant 0 : i32
    %c0_i32_0 = arith.constant 0 : i32
    %c0_i32_1 = arith.constant 0 : i32
    return %arg0, %1, %c0_i32, %c0_i32_0 : i32, i32, i32, i32
  }
  func.func @transform_2(%arg0: i32, %arg1: i32) -> (i32, i32, i32) {
    %c0_i32 = arith.constant 0 : i32
    %c0_i32_0 = arith.constant 0 : i32
    %c0_i32_1 = arith.constant 0 : i32
    %c0_i32_2 = arith.constant 0 : i32
    return %c0_i32, %c0_i32_0, %c0_i32_1 : i32, i32, i32
  }
  func.func @transform_3(%arg0: i32, %arg1: i32) -> (i32, i32) {
    %c0_i32 = arith.constant 0 : i32
    %c0_i32_0 = arith.constant 0 : i32
    %c0_i32_1 = arith.constant 0 : i32
    return %c0_i32, %c0_i32_0 : i32, i32
  }
  func.func @transform_4(%arg0: i32, %arg1: i32) -> (i32, i32, i32) {
    %c0_i32 = arith.constant 0 : i32
    %c0_i32_0 = arith.constant 0 : i32
    return %arg0, %c0_i32, %arg1 : i32, i32, i32
  }
}

</mosaic_0001>

<llo_original>
// kernel: tpu_custom_call.1
$region0: #{tpu_custom_call.1}
  #allocation0 [shape = 'u32[]', space=smem, size = 0x4, offset = 0x4, fixed_abs, tag = 'smem constant byte address 0x4 - core index']
  #allocation1 [shape = 'u32[144,128]{1,0:T(1,128)}', space=vmem, size = 0x12000, scoped, tag = 'internal scratch']
  #allocation2 [shape = 'f32[5,5,48]{2,1,0:T(8,128)}', space=vmem, size = 0x5000, scoped, tag = 'scratch operand']
  #allocation3 [shape = 'f32[16,48]{1,0:T(8,128)}', space=vmem, size = 0x2000, scoped, tag = 'scratch operand']
  %s0 = inlined_call_operand.vmem [shape: f32[4,5,5,48], index: 0, kind: input, shape index: {}]
  %s1 = inlined_call_operand.vmem [shape: f32[4,5,5,48], index: 1, kind: input, shape index: {}]
  %s2 = inlined_call_operand.vmem [shape: f32[4,48,48], index: 2, kind: input, shape index: {}]
  %s3 = inlined_call_operand.vmem [shape: f32[1,48], index: 3, kind: input, shape index: {}]
  %s4 = inlined_call_operand.vmem [shape: f32[4,48,16], index: 4, kind: output, shape index: {}]
  %s5 = sld [smem:[#allocation0]]
  $region49: #{tpu_custom_call.1} parent=0
    _
  %s7 = ssub.s32 1, %s5
  %s8 = scalar_select 0, %s7, %s5
  loop: start=0, step=1, limit=6
  $region2: #{tpu_custom_call.1} parent=0 // loop_pre_header
    _
  $region3: #{tpu_custom_call.1} parent=0 // loop_header
    %s10 = sphi 0, %s14
    %p11 = scmp.ge.s32.totalorder %s10, 6
    %s17 = sphi 0, %s29
    %s18 = sphi 0, %s25
    %s19 = sphi 0, %s17
    %s20 = sphi 0, %s18
    %s21 = sphi 0, %s19
    %s22 = sphi 0, %s20
    %s34 = sphi 0, %s36
    %s37 = sphi 0, %s34
    %s38 = sphi 0, %s37
    %s54 = sphi 0, %s38
    %s66 = sphi 0, %s68
    %s69 = sphi 0, %s66
    %s70 = sphi 0, %s69
    %s86 = sphi 0, %s70
    %s90 = sphi 0, %s90
    %s92 = sphi 0, %s90
    %s93 = sphi 0, %s92
    %s107 = sphi 0, %s93
    %s111 = sphi 0, %s111
    %s113 = sphi 0, %s111
    %s114 = sphi 0, %s113
    %s128 = sphi 0, %s114
    %s136 = sphi 0, %s138
    %s139 = sphi 0, %s136
    %s140 = sphi 0, %s139
    %s156 = sphi 0, %s140
  $region4: #{tpu_custom_call.1} parent=0 // loop_header_branch
    %13 = sbr.rel (%p11) target = $region8
  $region5: #{tpu_custom_call.1} parent=0 // loop_body
    %s15 = ssub.s32 %s10, 1
    %s16 = ssub.s32 %s10, 2
    %s23 = sadd.s32 1, %s18
    %p24 = scmp.ge.s32.totalorder %s23, 1
    %s25 = scalar_select %p24, 0, %s23
    %s26 = sadd.s32 1, %s17
    %s27 = scalar_select %p24, %s26, %s17
    %p28 = scmp.ge.s32.totalorder %s27, 4
    %s29 = scalar_select %p28, 0, %s27
    %s30 = ssub.s32 %s17, %s29
    %s31 = ssub.s32 %s18, %s25
    %s32 = sor.u32 %s30, %s31
    %p33 = scmp.eq.s32.totalorder %s32, 0
    %s35 = sadd.s32 %s34, 1
    %s36 = scalar_select %p33, %s34, %s35
    %p39 = pneg %p33
    %p40 = scmp.eq.s32.totalorder %s10, 3
    %p41 = por %p39, %p40
    %p42 = scmp.ne.s32.totalorder %s34, %s37
    %p43 = scmp.eq.s32.totalorder %s10, 0
    %p44 = por %p42, %p43
    %p45 = scmp.ne.s32.totalorder %s34, %s37
    %p46 = scmp.eq.s32.totalorder %s15, 3
    %p47 = por %p45, %p46
    %p48 = scmp.ne.s32.totalorder %s37, %s38
    %p49 = scmp.eq.s32.totalorder %s15, 0
    %p50 = por %p48, %p49
    %p51 = scmp.ne.s32.totalorder %s37, %s38
    %p52 = scmp.eq.s32.totalorder %s16, 3
    %p53 = por %p51, %p52
    %p55 = scmp.ne.s32.totalorder %s38, %s54
    %p56 = scmp.eq.s32.totalorder %s16, 0
    %p57 = por %p55, %p56
    %s58 = sadd.s32 %s18, 1
    %s59 = smul.u32 %s58, 4
    %s60 = sadd.s32 %s25, 1
    %s61 = smul.u32 %s60, 4
    %s62 = ssub.s32 %s17, %s29
    %s63 = ssub.s32 %s59, %s61
    %s64 = sor.u32 %s62, %s63
    %p65 = scmp.eq.s32.totalorder %s64, 0
    %s67 = sadd.s32 %s66, 1
    %s68 = scalar_select %p65, %s66, %s67
    %p71 = pneg %p65
    %p72 = scmp.eq.s32.totalorder %s10, 3
    %p73 = por %p71, %p72
    %p74 = scmp.ne.s32.totalorder %s66, %s69
    %p75 = scmp.eq.s32.totalorder %s10, 0
    %p76 = por %p74, %p75
    %p77 = scmp.ne.s32.totalorder %s66, %s69
    %p78 = scmp.eq.s32.totalorder %s15, 3
    %p79 = por %p77, %p78
    %p80 = scmp.ne.s32.totalorder %s69, %s70
    %p81 = scmp.eq.s32.totalorder %s15, 0
    %p82 = por %p80, %p81
    %p83 = scmp.ne.s32.totalorder %s69, %s70
    %p84 = scmp.eq.s32.totalorder %s16, 3
    %p85 = por %p83, %p84
    %p87 = scmp.ne.s32.totalorder %s70, %s86
    %p88 = scmp.eq.s32.totalorder %s16, 0
    %p89 = por %p87, %p88
    %s91 = sadd.s32 %s90, 1
    %p94 = scmp.eq.s32.totalorder %s10, 3
    %p95 = scmp.ne.s32.totalorder %s90, %s92
    %p96 = scmp.eq.s32.totalorder %s10, 0
    %p97 = por %p95, %p96
    %p98 = scmp.ne.s32.totalorder %s90, %s92
    %p99 = scmp.eq.s32.totalorder %s15, 3
    %p100 = por %p98, %p99
    %p101 = scmp.ne.s32.totalorder %s92, %s93
    %p102 = scmp.eq.s32.totalorder %s15, 0
    %p103 = por %p101, %p102
    %p104 = scmp.ne.s32.totalorder %s92, %s93
    %p105 = scmp.eq.s32.totalorder %s16, 3
    %p106 = por %p104, %p105
    %p108 = scmp.ne.s32.totalorder %s93, %s107
    %p109 = scmp.eq.s32.totalorder %s16, 0
    %p110 = por %p108, %p109
    %s112 = sadd.s32 %s111, 1
    %p115 = scmp.eq.s32.totalorder %s10, 3
    %p116 = scmp.ne.s32.totalorder %s111, %s113
    %p117 = scmp.eq.s32.totalorder %s10, 0
    %p118 = por %p116, %p117
    %p119 = scmp.ne.s32.totalorder %s111, %s113
    %p120 = scmp.eq.s32.totalorder %s15, 3
    %p121 = por %p119, %p120
    %p122 = scmp.ne.s32.totalorder %s113, %s114
    %p123 = scmp.eq.s32.totalorder %s15, 0
    %p124 = por %p122, %p123
    %p125 = scmp.ne.s32.totalorder %s113, %s114
    %p126 = scmp.eq.s32.totalorder %s16, 3
    %p127 = por %p125, %p126
    %p129 = scmp.ne.s32.totalorder %s114, %s128
    %p130 = scmp.eq.s32.totalorder %s16, 0
    %p131 = por %p129, %p130
    %s132 = ssub.s32 %s17, %s29
    %s133 = ssub.s32 %s18, %s25
    %s134 = sor.u32 %s132, %s133
    %p135 = scmp.eq.s32.totalorder %s134, 0
    %s137 = sadd.s32 %s136, 1
    %s138 = scalar_select %p135, %s136, %s137
    %p141 = pneg %p135
    %p142 = scmp.eq.s32.totalorder %s10, 3
    %p143 = por %p141, %p142
    %p144 = scmp.ne.s32.totalorder %s136, %s139
    %p145 = scmp.eq.s32.totalorder %s10, 0
    %p146 = por %p144, %p145
    %p147 = scmp.ne.s32.totalorder %s136, %s139
    %p148 = scmp.eq.s32.totalorder %s15, 3
    %p149 = por %p147, %p148
    %p150 = scmp.ne.s32.totalorder %s139, %s140
    %p151 = scmp.eq.s32.totalorder %s15, 0
    %p152 = por %p150, %p151
    %p153 = scmp.ne.s32.totalorder %s139, %s140
    %p154 = scmp.eq.s32.totalorder %s16, 3
    %p155 = por %p153, %p154
    %p157 = scmp.ne.s32.totalorder %s140, %s156
    %p158 = scmp.eq.s32.totalorder %s16, 0
    %p159 = por %p157, %p158
    %p160 = scmp.le.s32.totalorder 1, %s10
    %p161 = scmp.lt.s32.totalorder %s10, 5
    %p162 = pnand %p160, %p161
    %p163 = pneg %p162
    // Predicated region
    $region9: #{tpu_custom_call.1} parent=5 // pred_check
      _
    $region10: #{tpu_custom_call.1} parent=5 // pred_check_branch
      %165 = sbr.rel (%p162) target = $region12
    $region11: #{tpu_custom_call.1} parent=5 // pred_region
      %s166 = ssub.s32 %s10, 1
      // Predicated region
      $region13: #{tpu_custom_call.1} parent=11 // pred_check
        %p167 = pneg %p103
      $region14: #{tpu_custom_call.1} parent=11 // pred_check_branch
        %169 = sbr.rel (%p167) target = $region16
      $region15: #{tpu_custom_call.1} parent=11 // pred_region
        _
      $region16: #{tpu_custom_call.1} parent=11 // pred_fallthru
        _
      // Predicated region
      $region17: #{tpu_custom_call.1} parent=11 // pred_check
        %p170 = pneg %p124
      $region18: #{tpu_custom_call.1} parent=11 // pred_check_branch
        %172 = sbr.rel (%p170) target = $region20
      $region19: #{tpu_custom_call.1} parent=11 // pred_region
        _
      $region20: #{tpu_custom_call.1} parent=11 // pred_fallthru
        _
    $region12: #{tpu_custom_call.1} parent=5 // pred_fallthru
      _
    %p173 = scmp.lt.s32.totalorder %s10, 4
    // Predicated region
    $region21: #{tpu_custom_call.1} parent=5 // pred_check
      %p174 = pneg %p173
    $region22: #{tpu_custom_call.1} parent=5 // pred_check_branch
      %176 = sbr.rel (%p174) target = $region24
    $region23: #{tpu_custom_call.1} parent=5 // pred_region
      // Predicated region
      $region25: #{tpu_custom_call.1} parent=23 // pred_check
        %p177 = pneg %p44
      $region26: #{tpu_custom_call.1} parent=23 // pred_check_branch
        %179 = sbr.rel (%p177) target = $region28
      $region27: #{tpu_custom_call.1} parent=23 // pred_region
        %s180 = smul.u32 4, %s18
        %s181 = ssub.s32 5, %s180
        %p182 = scmp.lt.s32.totalorder %s181, 4
        %s183 = scalar_select %p182, %s181, 4
        %s184 = smul.u32 128, %s183
        %p185 = scmp.lt.s32.totalorder %s17, 3
        %s186 = scalar_select %p185, %s17, 3
        %p187 = scmp.lt.s32.totalorder %s180, 4
        %s188 = scalar_select %p187, %s180, 4
        %s189 = smul.addr %s186, 5
        %s190 = sadd.s32 %s188, %s189
        %s191 = smul.addr %s190, 8
        %s192 = scalar_lea.vmem %s0, %s191
        %s193 = smul.u32 4, %s18
        %s194 = ssub.s32 5, %s193
        %p195 = scmp.lt.s32.totalorder %s194, 4
        %s196 = scalar_select %p195, %s194, 4
        %s197 = smul.u32 128, %s196
      $region28: #{tpu_custom_call.1} parent=23 // pred_fallthru
        _
      // Predicated region
      $region29: #{tpu_custom_call.1} parent=23 // pred_check
        %p198 = pneg %p76
      $region30: #{tpu_custom_call.1} parent=23 // pred_check_branch
        %200 = sbr.rel (%p198) target = $region32
      $region31: #{tpu_custom_call.1} parent=23 // pred_region
        %s201 = sadd.s32 %s18, 1
        %s202 = smul.u32 %s201, 4
        %p203 = scmp.lt.s32.totalorder %s17, 3
        %s204 = scalar_select %p203, %s17, 3
        %p205 = scmp.lt.s32.totalorder %s202, 4
        %s206 = scalar_select %p205, %s202, 4
        %s207 = smul.addr %s204, 5
        %s208 = sadd.s32 %s206, %s207
        %s209 = smul.addr %s208, 8
        %s210 = scalar_lea.vmem %s1, %s209
        %s211 = sadd.s32 %s18, 1
        %s212 = smul.u32 %s211, 4
      $region32: #{tpu_custom_call.1} parent=23 // pred_fallthru
        _
    $region24: #{tpu_custom_call.1} parent=5 // pred_fallthru
      _
    %p213 = scmp.le.s32.totalorder 1, %s10
    %p214 = scmp.lt.s32.totalorder %s10, 5
    %p215 = pnand %p213, %p214
    %p216 = pneg %p215
    // Predicated region
    $region33: #{tpu_custom_call.1} parent=5 // pred_check
      _
    $region34: #{tpu_custom_call.1} parent=5 // pred_check_branch
      %218 = sbr.rel (%p215) target = $region36
    $region35: #{tpu_custom_call.1} parent=5 // pred_region
      %s219 = ssub.s32 %s10, 1
      %s220 = smul.u32 4, %s20
      %s221 = ssub.s32 5, %s220
      %p222 = scmp.lt.s32.totalorder %s221, 4
      %s223 = scalar_select %p222, %s221, 4
      %s224 = smul.u32 128, %s223
      %p225 = scmp.lt.s32.totalorder %s19, 3
      %s226 = scalar_select %p225, %s19, 3
      %p227 = scmp.lt.s32.totalorder %s220, 4
      %s228 = scalar_select %p227, %s220, 4
      %s229 = smul.addr %s226, 5
      %s230 = sadd.s32 %s228, %s229
      %s231 = smul.addr %s230, 8
      %s232 = scalar_lea.vmem %s0, %s231
      %p233 = pneg %p50
      %p234 = pneg %p47
      %s235 = sadd.s32 %s20, 1
      %s236 = smul.u32 %s235, 4
      %p237 = scmp.lt.s32.totalorder %s19, 3
      %s238 = scalar_select %p237, %s19, 3
      %p239 = scmp.lt.s32.totalorder %s236, 4
      %s240 = scalar_select %p239, %s236, 4
      %s241 = smul.addr %s238, 5
      %s242 = sadd.s32 %s240, %s241
      %s243 = smul.addr %s242, 8
      %s244 = scalar_lea.vmem %s1, %s243
      %p245 = pneg %p82
      %p246 = pneg %p79
      %p247 = pneg %p103
      %p248 = pneg %p100
      %p249 = pneg %p124
      %p250 = pneg %p121
      %p251 = pneg %p152
      %p252 = pneg %p149
      %p253 = scmp.lt.s32.totalorder %s19, 3
      %s254 = scalar_select %p253, %s19, 3
      %p255 = scmp.lt.s32.totalorder %s20, 0
      %s256 = scalar_select %p255, %s20, 0
      %s257 = smul.addr %s254, 6
      %s258 = sadd.s32 %s256, %s257
      %s259 = smul.addr %s258, 8
      %s260 = scalar_lea.vmem %s4, %s259
      %s261 = smul.u32 4, %s20
      %s262 = ssub.s32 5, %s261
      %p263 = scmp.lt.s32.totalorder %s262, 4
      %s264 = scalar_select %p263, %s262, 4
      %s265 = smul.u32 128, %s264
      %p266 = scmp.lt.s32.totalorder %s19, 3
      %s267 = scalar_select %p266, %s19, 3
      %p268 = scmp.lt.s32.totalorder %s261, 4
      %s269 = scalar_select %p268, %s261, 4
      %s270 = smul.addr %s267, 5
      %s271 = sadd.s32 %s269, %s270
      %s272 = smul.addr %s271, 8
      %s273 = scalar_lea.vmem %s0, %s272
      %s274 = smul.u32 4, %s20
      %s275 = ssub.s32 5, %s274
      %p276 = scmp.lt.s32.totalorder %s275, 4
      %s277 = scalar_select %p276, %s275, 4
      %s278 = smul.u32 128, %s277
      %s279 = sadd.s32 %s20, 1
      %s280 = smul.u32 %s279, 4
      %p281 = scmp.lt.s32.totalorder %s19, 3
      %s282 = scalar_select %p281, %s19, 3
      %p283 = scmp.lt.s32.totalorder %s280, 4
      %s284 = scalar_select %p283, %s280, 4
      %s285 = smul.addr %s282, 5
      %s286 = sadd.s32 %s284, %s285
      %s287 = smul.addr %s286, 8
      %s288 = scalar_lea.vmem %s1, %s287
      %s289 = sadd.s32 %s20, 1
      %s290 = smul.u32 %s289, 4
      %p291 = scmp.lt.s32.totalorder %s19, 3
      %s292 = scalar_select %p291, %s19, 3
      %p293 = scmp.lt.s32.totalorder %s20, 0
      %s294 = scalar_select %p293, %s20, 0
      %s295 = smul.addr %s292, 6
      %s296 = sadd.s32 %s294, %s295
      %s297 = smul.addr %s296, 8
      %s298 = scalar_lea.vmem %s4, %s297
      %v299 = vld [vmem:[%s273] sm:$0x1f]
      %v300 = vld [vmem:[%s273 + $0x8] sm:$0x1f]
      %v301 = vld [vmem:[%s273 + $0x10] sm:$0x1f]
      %v302 = vld [vmem:[%s273 + $0x18] sm:$0x1f]
      %vm303 = vcmask 389120
      %304 = vst.msk [vmem:[#allocation2] sm:$0x1f] %vm303, %v299
      %305 = vst.msk [vmem:[#allocation2 + $0x8] sm:$0x1f] %vm303, %v300
      %306 = vst.msk [vmem:[#allocation2 + $0x10] sm:$0x1f] %vm303, %v301
      %307 = vst.msk [vmem:[#allocation2 + $0x18] sm:$0x1f] %vm303, %v302
      %v308 = vld [vmem:[%s288] sm:$0x1f]
      %s309 = scalar_lea.vmem [#allocation2], 32
      %310 = vst.msk [vmem:[%s309] sm:$0x1f] %vm303, %v308
      %v311 = vld [vmem:[#allocation2] sm:$0xf]
      %v312 = vld [vmem:[#allocation2 + $0x8] sm:$0xf]
      %v313 = vld [vmem:[#allocation2 + $0x10] sm:$0xf]
      %v314 = vld [vmem:[#allocation2 + $0x18] sm:$0xf]
      %v315 = vld [vmem:[%s2] sm:$0xff]
      %v316 = vld [vmem:[%s2 + $0x8] sm:$0xff]
      %v317 = vld [vmem:[%s2 + $0x10] sm:$0xff]
      %v318 = vld [vmem:[%s2 + $0x18] sm:$0xff]
      %v319 = vld [vmem:[%s2 + $0x20] sm:$0xff]
      %v320 = vld [vmem:[%s2 + $0x28] sm:$0xff]
      %v325 = vcombine.low %v311, %v312
      %v326 = vcombine.low %v313, %v314
      %vm327 = vcmask 392192
      %v328 = vsel %vm327, %v325, 0
      %v330 = vsel %vm327, %v326, 0
      %332 = vmatprep.subr.mxu0 0.0
      %333 = vmatpush1.msra.mxu0 0.0
      %334 = vmatprep.subr.mxu0 0.0
      %335 = vmatpush1.msra.mxu0 0.0
      %336 = vmatprep.subr.mxu0 0.0
      %337 = vmatpush1.msra.mxu0 0.0
      %338 = vmatprep.subr.mxu0 0.0
      %339 = vmatpush1.msra.mxu0 0.0
      %340 = vmatprep.subr.mxu0 0.0
      %341 = vmatpush1.msra.mxu0 0.0
      %342 = vmatprep.subr.mxu0 0.0
      %343 = vmatpush1.msra.mxu0 0.0
      %344 = vmatprep.subr.mxu0 0.0
      %345 = vmatpush1.msra.mxu0 0.0
      %346 = vmatprep.subr.mxu0 0.0
      %347 = vmatpush1.msra.mxu0 0.0
      %348 = vmatprep.subr.mxu0 0.0
      %349 = vmatpush1.msra.mxu0 0.0
      %350 = vmatprep.subr.mxu0 0.0
      %351 = vmatpush1.msra.mxu0 0.0
      %352 = vmatprep.subr.mxu0 0.0
      %353 = vmatpush1.msra.mxu0 %v320
      %354 = vmatprep.subr.mxu0 0.0
      %355 = vmatpush1.msra.mxu0 %v319
      %356 = vmatprep.subr.mxu0 0.0
      %357 = vmatpush1.msra.mxu0 %v318
      %358 = vmatprep.subr.mxu0 0.0
      %359 = vmatpush1.msra.mxu0 %v317
      %360 = vmatprep.subr.mxu0 0.0
      %361 = vmatpush1.msra.mxu0 %v316
      %362 = vmatprep.subr.mxu0 0.0
      %363 = vmatpush1.msra.mxu0 %v315
      %364 = vmatprep.subr.mxu0 0.0
      %365 = vmatpush2.msra.mxu0 0.0
      %366 = vmatprep.subr.mxu0 0.0
      %367 = vmatpush2.msra.mxu0 0.0
      %368 = vmatprep.subr.mxu0 0.0
      %369 = vmatpush2.msra.mxu0 0.0
      %370 = vmatprep.subr.mxu0 0.0
      %371 = vmatpush2.msra.mxu0 0.0
      %372 = vmatprep.subr.mxu0 0.0
      %373 = vmatpush2.msra.mxu0 0.0
      %374 = vmatprep.subr.mxu0 0.0
      %375 = vmatpush2.msra.mxu0 0.0
      %376 = vmatprep.subr.mxu0 0.0
      %377 = vmatpush2.msra.mxu0 0.0
      %378 = vmatprep.subr.mxu0 0.0
      %379 = vmatpush2.msra.mxu0 0.0
      %380 = vmatprep.subr.mxu0 0.0
      %381 = vmatpush2.msra.mxu0 0.0
      %382 = vmatprep.subr.mxu0 0.0
      %383 = vmatpush2.msra.mxu0 0.0
      %384 = vmatprep.subr.mxu0 0.0
      %385 = vmatpush2.msra.mxu0 0.0
      %386 = vmatprep.subr.mxu0 0.0
      %387 = vmatpush2.msra.mxu0 0.0
      %388 = vmatprep.subr.mxu0 0.0
      %389 = vmatpush2.msra.mxu0 0.0
      %390 = vmatprep.subr.mxu0 0.0
      %391 = vmatpush2.msra.mxu0 0.0
      %392 = vmatprep.subr.mxu0 0.0
      %393 = vmatpush2.msra.mxu0 0.0
      %394 = vmatprep.subr.mxu0 0.0
      %395 = vmatpush2.msra.mxu0 0.0
      %396 = vmatprep.mubr.f32.mxu0 0.0
      %397 = vmatmul.mubr.f32.gmra.mxu0 %v328
      %v398 = vpop.f32.mrf.mxu0
      %v399 = vadd.f32 0.0, %v398
      %v400 = vpop.f32.mrf.mxu0
      %401 = vmatprep.mubr.f32.mxu0 0.0
      %402 = vmatmul.mubr.f32.gmra.mxu0 %v330
      %v403 = vpop.f32.mrf.mxu0
      %v404 = vadd.f32 0.0, %v403
      %v405 = vpop.f32.mrf.mxu0
      %406 = vdwg.mxu0
      %407 = vst.msk [vmem:[#allocation3] sm:$0xff] %vm327, %v399
      %408 = vst.msk [vmem:[#allocation3 + $0x8] sm:$0xff] %vm327, %v404
      %v409 = vld [vmem:[#allocation2 + $0x1] sm:$0xf]
      %v410 = vld [vmem:[#allocation2 + $0x9] sm:$0xf]
      %v411 = vld [vmem:[#allocation2 + $0x11] sm:$0xf]
      %v412 = vld [vmem:[#allocation2 + $0x19] sm:$0xf]
      %s413 = scalar_lea.vmem %s2, 48
      %v414 = vld [vmem:[%s413] sm:$0xff]
      %v415 = vld [vmem:[%s413 + $0x8] sm:$0xff]
      %v416 = vld [vmem:[%s413 + $0x10] sm:$0xff]
      %v417 = vld [vmem:[%s413 + $0x18] sm:$0xff]
      %v418 = vld [vmem:[%s413 + $0x20] sm:$0xff]
      %v419 = vld [vmem:[%s413 + $0x28] sm:$0xff]
      %v424 = vcombine.low %v409, %v410
      %v425 = vcombine.low %v411, %v412
      %v426 = vsel %vm327, %v424, 0
      %v428 = vsel %vm327, %v425, 0
      %430 = vmatprep.subr.mxu0 0.0
      %431 = vmatpush1.msra.mxu0 0.0
      %432 = vmatprep.subr.mxu0 0.0
      %433 = vmatpush1.msra.mxu0 0.0
      %434 = vmatprep.subr.mxu0 0.0
      %435 = vmatpush1.msra.mxu0 0.0
      %436 = vmatprep.subr.mxu0 0.0
      %437 = vmatpush1.msra.mxu0 0.0
      %438 = vmatprep.subr.mxu0 0.0
      %439 = vmatpush1.msra.mxu0 0.0
      %440 = vmatprep.subr.mxu0 0.0
      %441 = vmatpush1.msra.mxu0 0.0
      %442 = vmatprep.subr.mxu0 0.0
      %443 = vmatpush1.msra.mxu0 0.0
      %444 = vmatprep.subr.mxu0 0.0
      %445 = vmatpush1.msra.mxu0 0.0
      %446 = vmatprep.subr.mxu0 0.0
      %447 = vmatpush1.msra.mxu0 0.0
      %448 = vmatprep.subr.mxu0 0.0
      %449 = vmatpush1.msra.mxu0 0.0
      %450 = vmatprep.subr.mxu0 0.0
      %451 = vmatpush1.msra.mxu0 %v419
      %452 = vmatprep.subr.mxu0 0.0
      %453 = vmatpush1.msra.mxu0 %v418
      %454 = vmatprep.subr.mxu0 0.0
      %455 = vmatpush1.msra.mxu0 %v417
      %456 = vmatprep.subr.mxu0 0.0
      %457 = vmatpush1.msra.mxu0 %v416
      %458 = vmatprep.subr.mxu0 0.0
      %459 = vmatpush1.msra.mxu0 %v415
      %460 = vmatprep.subr.mxu0 0.0
      %461 = vmatpush1.msra.mxu0 %v414
      %462 = vmatprep.subr.mxu0 0.0
      %463 = vmatpush2.msra.mxu0 0.0
      %464 = vmatprep.subr.mxu0 0.0
      %465 = vmatpush2.msra.mxu0 0.0
      %466 = vmatprep.subr.mxu0 0.0
      %467 = vmatpush2.msra.mxu0 0.0
      %468 = vmatprep.subr.mxu0 0.0
      %469 = vmatpush2.msra.mxu0 0.0
      %470 = vmatprep.subr.mxu0 0.0
      %471 = vmatpush2.msra.mxu0 0.0
      %472 = vmatprep.subr.mxu0 0.0
      %473 = vmatpush2.msra.mxu0 0.0
      %474 = vmatprep.subr.mxu0 0.0
      %475 = vmatpush2.msra.mxu0 0.0
      %476 = vmatprep.subr.mxu0 0.0
      %477 = vmatpush2.msra.mxu0 0.0
      %478 = vmatprep.subr.mxu0 0.0
      %479 = vmatpush2.msra.mxu0 0.0
      %480 = vmatprep.subr.mxu0 0.0
      %481 = vmatpush2.msra.mxu0 0.0
      %482 = vmatprep.subr.mxu0 0.0
      %483 = vmatpush2.msra.mxu0 0.0
      %484 = vmatprep.subr.mxu0 0.0
      %485 = vmatpush2.msra.mxu0 0.0
      %486 = vmatprep.subr.mxu0 0.0
      %487 = vmatpush2.msra.mxu0 0.0
      %488 = vmatprep.subr.mxu0 0.0
      %489 = vmatpush2.msra.mxu0 0.0
      %490 = vmatprep.subr.mxu0 0.0
      %491 = vmatpush2.msra.mxu0 0.0
      %492 = vmatprep.subr.mxu0 0.0
      %493 = vmatpush2.msra.mxu0 0.0
      %494 = vmatprep.mubr.f32.mxu0 0.0
      %495 = vmatmul.mubr.f32.gmra.mxu0 %v426
      %v496 = vpop.f32.mrf.mxu0
      %v497 = vadd.f32 0.0, %v496
      %v498 = vpop.f32.mrf.mxu0
      %499 = vmatprep.mubr.f32.mxu0 0.0
      %500 = vmatmul.mubr.f32.gmra.mxu0 %v428
      %v501 = vpop.f32.mrf.mxu0
      %v502 = vadd.f32 0.0, %v501
      %v503 = vpop.f32.mrf.mxu0
      %504 = vdwg.mxu0
      %v505 = vld [vmem:[#allocation3] sm:$0xff]
      %v506 = vld [vmem:[#allocation3 + $0x8] sm:$0xff]
      %v507 = vadd.f32 %v505, %v497
      %v508 = vadd.f32 %v506, %v502
      %509 = vst.msk [vmem:[#allocation3] sm:$0xff] %vm327, %v507
      %510 = vst.msk [vmem:[#allocation3 + $0x8] sm:$0xff] %vm327, %v508
      %s511 = scalar_lea.vmem [#allocation2], 8
      %v512 = vld [vmem:[%s511] sm:$0xf]
      %v513 = vld [vmem:[%s511 + $0x8] sm:$0xf]
      %v514 = vld [vmem:[%s511 + $0x10] sm:$0xf]
      %v515 = vld [vmem:[%s511 + $0x18] sm:$0xf]
      %s516 = scalar_lea.vmem %s2, 96
      %v517 = vld [vmem:[%s516] sm:$0xff]
      %v518 = vld [vmem:[%s516 + $0x8] sm:$0xff]
      %v519 = vld [vmem:[%s516 + $0x10] sm:$0xff]
      %v520 = vld [vmem:[%s516 + $0x18] sm:$0xff]
      %v521 = vld [vmem:[%s516 + $0x20] sm:$0xff]
      %v522 = vld [vmem:[%s516 + $0x28] sm:$0xff]
      %v527 = vcombine.low %v512, %v513
      %v528 = vcombine.low %v514, %v515
      %v529 = vsel %vm327, %v527, 0
      %v531 = vsel %vm327, %v528, 0
      %533 = vmatprep.subr.mxu0 0.0
      %534 = vmatpush1.msra.mxu0 0.0
      %535 = vmatprep.subr.mxu0 0.0
      %536 = vmatpush1.msra.mxu0 0.0
      %537 = vmatprep.subr.mxu0 0.0
      %538 = vmatpush1.msra.mxu0 0.0
      %539 = vmatprep.subr.mxu0 0.0
      %540 = vmatpush1.msra.mxu0 0.0
      %541 = vmatprep.subr.mxu0 0.0
      %542 = vmatpush1.msra.mxu0 0.0
      %543 = vmatprep.subr.mxu0 0.0
      %544 = vmatpush1.msra.mxu0 0.0
      %545 = vmatprep.subr.mxu0 0.0
      %546 = vmatpush1.msra.mxu0 0.0
      %547 = vmatprep.subr.mxu0 0.0
      %548 = vmatpush1.msra.mxu0 0.0
      %549 = vmatprep.subr.mxu0 0.0
      %550 = vmatpush1.msra.mxu0 0.0
      %551 = vmatprep.subr.mxu0 0.0
      %552 = vmatpush1.msra.mxu0 0.0
      %553 = vmatprep.subr.mxu0 0.0
      %554 = vmatpush1.msra.mxu0 %v522
      %555 = vmatprep.subr.mxu0 0.0
      %556 = vmatpush1.msra.mxu0 %v521
      %557 = vmatprep.subr.mxu0 0.0
      %558 = vmatpush1.msra.mxu0 %v520
      %559 = vmatprep.subr.mxu0 0.0
      %560 = vmatpush1.msra.mxu0 %v519
      %561 = vmatprep.subr.mxu0 0.0
      %562 = vmatpush1.msra.mxu0 %v518
      %563 = vmatprep.subr.mxu0 0.0
      %564 = vmatpush1.msra.mxu0 %v517
      %565 = vmatprep.subr.mxu0 0.0
      %566 = vmatpush2.msra.mxu0 0.0
      %567 = vmatprep.subr.mxu0 0.0
      %568 = vmatpush2.msra.mxu0 0.0
      %569 = vmatprep.subr.mxu0 0.0
      %570 = vmatpush2.msra.mxu0 0.0
      %571 = vmatprep.subr.mxu0 0.0
      %572 = vmatpush2.msra.mxu0 0.0
      %573 = vmatprep.subr.mxu0 0.0
      %574 = vmatpush2.msra.mxu0 0.0
      %575 = vmatprep.subr.mxu0 0.0
      %576 = vmatpush2.msra.mxu0 0.0
      %577 = vmatprep.subr.mxu0 0.0
      %578 = vmatpush2.msra.mxu0 0.0
      %579 = vmatprep.subr.mxu0 0.0
      %580 = vmatpush2.msra.mxu0 0.0
      %581 = vmatprep.subr.mxu0 0.0
      %582 = vmatpush2.msra.mxu0 0.0
      %583 = vmatprep.subr.mxu0 0.0
      %584 = vmatpush2.msra.mxu0 0.0
      %585 = vmatprep.subr.mxu0 0.0
      %586 = vmatpush2.msra.mxu0 0.0
      %587 = vmatprep.subr.mxu0 0.0
      %588 = vmatpush2.msra.mxu0 0.0
      %589 = vmatprep.subr.mxu0 0.0
      %590 = vmatpush2.msra.mxu0 0.0
      %591 = vmatprep.subr.mxu0 0.0
      %592 = vmatpush2.msra.mxu0 0.0
      %593 = vmatprep.subr.mxu0 0.0
      %594 = vmatpush2.msra.mxu0 0.0
      %595 = vmatprep.subr.mxu0 0.0
      %596 = vmatpush2.msra.mxu0 0.0
      %597 = vmatprep.mubr.f32.mxu0 0.0
      %598 = vmatmul.mubr.f32.gmra.mxu0 %v529
      %v599 = vpop.f32.mrf.mxu0
      %v600 = vadd.f32 0.0, %v599
      %v601 = vpop.f32.mrf.mxu0
      %602 = vmatprep.mubr.f32.mxu0 0.0
      %603 = vmatmul.mubr.f32.gmra.mxu0 %v531
      %v604 = vpop.f32.mrf.mxu0
      %v605 = vadd.f32 0.0, %v604
      %v606 = vpop.f32.mrf.mxu0
      %607 = vdwg.mxu0
      %v608 = vld [vmem:[#allocation3] sm:$0xff]
      %v609 = vld [vmem:[#allocation3 + $0x8] sm:$0xff]
      %v610 = vadd.f32 %v608, %v600
      %v611 = vadd.f32 %v609, %v605
      %612 = vst.msk [vmem:[#allocation3] sm:$0xff] %vm327, %v610
      %613 = vst.msk [vmem:[#allocation3 + $0x8] sm:$0xff] %vm327, %v611
      %v614 = vld [vmem:[%s511 + $0x1] sm:$0xf]
      %v615 = vld [vmem:[%s511 + $0x9] sm:$0xf]
      %v616 = vld [vmem:[%s511 + $0x11] sm:$0xf]
      %v617 = vld [vmem:[%s511 + $0x19] sm:$0xf]
      %s618 = scalar_lea.vmem %s2, 144
      %v619 = vld [vmem:[%s618] sm:$0xff]
      %v620 = vld [vmem:[%s618 + $0x8] sm:$0xff]
      %v621 = vld [vmem:[%s618 + $0x10] sm:$0xff]
      %v622 = vld [vmem:[%s618 + $0x18] sm:$0xff]
      %v623 = vld [vmem:[%s618 + $0x20] sm:$0xff]
      %v624 = vld [vmem:[%s618 + $0x28] sm:$0xff]
      %v629 = vcombine.low %v614, %v615
      %v630 = vcombine.low %v616, %v617
      %v631 = vsel %vm327, %v629, 0
      %v633 = vsel %vm327, %v630, 0
      %635 = vmatprep.subr.mxu0 0.0
      %636 = vmatpush1.msra.mxu0 0.0
      %637 = vmatprep.subr.mxu0 0.0
      %638 = vmatpush1.msra.mxu0 0.0
      %639 = vmatprep.subr.mxu0 0.0
      %640 = vmatpush1.msra.mxu0 0.0
      %641 = vmatprep.subr.mxu0 0.0
      %642 = vmatpush1.msra.mxu0 0.0
      %643 = vmatprep.subr.mxu0 0.0
      %644 = vmatpush1.msra.mxu0 0.0
      %645 = vmatprep.subr.mxu0 0.0
      %646 = vmatpush1.msra.mxu0 0.0
      %647 = vmatprep.subr.mxu0 0.0
      %648 = vmatpush1.msra.mxu0 0.0
      %649 = vmatprep.subr.mxu0 0.0
      %650 = vmatpush1.msra.mxu0 0.0
      %651 = vmatprep.subr.mxu0 0.0
      %652 = vmatpush1.msra.mxu0 0.0
      %653 = vmatprep.subr.mxu0 0.0
      %654 = vmatpush1.msra.mxu0 0.0
      %655 = vmatprep.subr.mxu0 0.0
      %656 = vmatpush1.msra.mxu0 %v624
      %657 = vmatprep.subr.mxu0 0.0
      %658 = vmatpush1.msra.mxu0 %v623
      %659 = vmatprep.subr.mxu0 0.0
      %660 = vmatpush1.msra.mxu0 %v622
      %661 = vmatprep.subr.mxu0 0.0
      %662 = vmatpush1.msra.mxu0 %v621
      %663 = vmatprep.subr.mxu0 0.0
      %664 = vmatpush1.msra.mxu0 %v620
      %665 = vmatprep.subr.mxu0 0.0
      %666 = vmatpush1.msra.mxu0 %v619
      %667 = vmatprep.subr.mxu0 0.0
      %668 = vmatpush2.msra.mxu0 0.0
      %669 = vmatprep.subr.mxu0 0.0
      %670 = vmatpush2.msra.mxu0 0.0
      %671 = vmatprep.subr.mxu0 0.0
      %672 = vmatpush2.msra.mxu0 0.0
      %673 = vmatprep.subr.mxu0 0.0
      %674 = vmatpush2.msra.mxu0 0.0
      %675 = vmatprep.subr.mxu0 0.0
      %676 = vmatpush2.msra.mxu0 0.0
      %677 = vmatprep.subr.mxu0 0.0
      %678 = vmatpush2.msra.mxu0 0.0
      %679 = vmatprep.subr.mxu0 0.0
      %680 = vmatpush2.msra.mxu0 0.0
      %681 = vmatprep.subr.mxu0 0.0
      %682 = vmatpush2.msra.mxu0 0.0
      %683 = vmatprep.subr.mxu0 0.0
      %684 = vmatpush2.msra.mxu0 0.0
      %685 = vmatprep.subr.mxu0 0.0
      %686 = vmatpush2.msra.mxu0 0.0
      %687 = vmatprep.subr.mxu0 0.0
      %688 = vmatpush2.msra.mxu0 0.0
      %689 = vmatprep.subr.mxu0 0.0
      %690 = vmatpush2.msra.mxu0 0.0
      %691 = vmatprep.subr.mxu0 0.0
      %692 = vmatpush2.msra.mxu0 0.0
      %693 = vmatprep.subr.mxu0 0.0
      %694 = vmatpush2.msra.mxu0 0.0
      %695 = vmatprep.subr.mxu0 0.0
      %696 = vmatpush2.msra.mxu0 0.0
      %697 = vmatprep.subr.mxu0 0.0
      %698 = vmatpush2.msra.mxu0 0.0
      %699 = vmatprep.mubr.f32.mxu0 0.0
      %700 = vmatmul.mubr.f32.gmra.mxu0 %v631
      %v701 = vpop.f32.mrf.mxu0
      %v702 = vadd.f32 0.0, %v701
      %v703 = vpop.f32.mrf.mxu0
      %704 = vmatprep.mubr.f32.mxu0 0.0
      %705 = vmatmul.mubr.f32.gmra.mxu0 %v633
      %v706 = vpop.f32.mrf.mxu0
      %v707 = vadd.f32 0.0, %v706
      %v708 = vpop.f32.mrf.mxu0
      %709 = vdwg.mxu0
      %v710 = vld [vmem:[#allocation3] sm:$0xff]
      %v711 = vld [vmem:[#allocation3 + $0x8] sm:$0xff]
      %v712 = vadd.f32 %v710, %v702
      %v713 = vadd.f32 %v711, %v707
      %714 = vst.msk [vmem:[#allocation3] sm:$0xff] %vm327, %v712
      %715 = vst.msk [vmem:[#allocation3 + $0x8] sm:$0xff] %vm327, %v713
      %v716 = vld [vmem:[#allocation3] sm:$0xff]
      %v717 = vld [vmem:[#allocation3 + $0x8] sm:$0xff]
      %v718 = vld [vmem:[%s3] sm:$0x1]
      %v720 = vlaneseq
      %v721 = vshrl.u32 %v720, 7
      %v722 = vsub.s32 0, %v721
      %v723 = vrot.slane %v718, %v722
      %v725 = vadd.f32 %v716, %v723
      %v726 = vadd.f32 %v717, %v723
      %727 = vxpose.xlu0.b32.start [1/16] %v725, 128
      %728 = vxpose.xlu0.b32.cont [2/16] %v726, 128
      %729 = vxpose.xlu0.b32.cont [3/16] 0.0, 128
      %730 = vxpose.xlu0.b32.cont [4/16] 0.0, 128
      %731 = vxpose.xlu0.b32.cont [5/16] 0.0, 128
      %732 = vxpose.xlu0.b32.cont [6/16] 0.0, 128
      %733 = vxpose.xlu0.b32.cont [7/16] 0.0, 128
      %734 = vxpose.xlu0.b32.cont [8/16] 0.0, 128
      %735 = vxpose.xlu0.b32.cont [9/16] 0.0, 128
      %736 = vxpose.xlu0.b32.cont [10/16] 0.0, 128
      %737 = vxpose.xlu0.b32.cont [11/16] 0.0, 128
      %738 = vxpose.xlu0.b32.cont [12/16] 0.0, 128
      %739 = vxpose.xlu0.b32.cont [13/16] 0.0, 128
      %740 = vxpose.xlu0.b32.cont [14/16] 0.0, 128
      %741 = vxpose.xlu0.b32.cont [15/16] 0.0, 128
      %742 = vxpose.xlu0.b32.end [16/16] 0.0, 128
      %v743 = vpop.trf.xlu0
      %v744 = vpop.trf.xlu0
      %v745 = vpop.trf.xlu0
      %v746 = vpop.trf.xlu0
      %v747 = vpop.trf.xlu0
      %v748 = vpop.trf.xlu0
      %v749 = vpop.trf.xlu0
      %v750 = vpop.trf.xlu0
      %v751 = vpop.trf.xlu0
      %v752 = vpop.trf.xlu0
      %v753 = vpop.trf.xlu0
      %v754 = vpop.trf.xlu0
      %v755 = vpop.trf.xlu0
      %v756 = vpop.trf.xlu0
      %v757 = vpop.trf.xlu0
      %v758 = vpop.trf.xlu0
      %vm759 = vcmask 130048
      %760 = vst.msk [vmem:[%s298] sm:$0xff] %vm759, %v743
      %761 = vst.msk [vmem:[%s298 + $0x8] sm:$0xff] %vm759, %v744
      %762 = vst.msk [vmem:[%s298 + $0x10] sm:$0xff] %vm759, %v745
      %763 = vst.msk [vmem:[%s298 + $0x18] sm:$0xff] %vm759, %v746
      %764 = vst.msk [vmem:[%s298 + $0x20] sm:$0xff] %vm759, %v747
      %765 = vst.msk [vmem:[%s298 + $0x28] sm:$0xff] %vm759, %v748
      %p766 = scmp.lt.s32.totalorder %s19, 3
      %s767 = scalar_select %p766, %s19, 3
      %p768 = scmp.lt.s32.totalorder %s20, 0
      %s769 = scalar_select %p768, %s20, 0
      %s770 = smul.addr %s767, 6
      %s771 = sadd.s32 %s769, %s770
      %s772 = smul.addr %s771, 8
      %s773 = scalar_lea.vmem %s4, %s772
      // Predicated region
      $region37: #{tpu_custom_call.1} parent=35 // pred_check
        %p774 = pneg %p149
      $region38: #{tpu_custom_call.1} parent=35 // pred_check_branch
        %776 = sbr.rel (%p774) target = $region40
      $region39: #{tpu_custom_call.1} parent=35 // pred_region
        _
      $region40: #{tpu_custom_call.1} parent=35 // pred_fallthru
        _
    $region36: #{tpu_custom_call.1} parent=5 // pred_fallthru
      _
    %p777 = scmp.le.s32.totalorder 2, %s10
    // Predicated region
    $region41: #{tpu_custom_call.1} parent=5 // pred_check
      %p778 = pneg %p777
    $region42: #{tpu_custom_call.1} parent=5 // pred_check_branch
      %780 = sbr.rel (%p778) target = $region44
    $region43: #{tpu_custom_call.1} parent=5 // pred_region
      %s781 = ssub.s32 %s10, 2
      // Predicated region
      $region45: #{tpu_custom_call.1} parent=43 // pred_check
        %p782 = pneg %p155
      $region46: #{tpu_custom_call.1} parent=43 // pred_check_branch
        %784 = sbr.rel (%p782) target = $region48
      $region47: #{tpu_custom_call.1} parent=43 // pred_region
        %p785 = scmp.lt.s32.totalorder %s21, 3
        %s786 = scalar_select %p785, %s21, 3
        %p787 = scmp.lt.s32.totalorder %s22, 0
        %s788 = scalar_select %p787, %s22, 0
        %s789 = smul.addr %s786, 6
        %s790 = sadd.s32 %s788, %s789
        %s791 = smul.addr %s790, 8
        %s792 = scalar_lea.vmem %s4, %s791
      $region48: #{tpu_custom_call.1} parent=43 // pred_fallthru
        _
    $region44: #{tpu_custom_call.1} parent=5 // pred_fallthru
      _
  $region6: #{tpu_custom_call.1} parent=0 // loop_footer
    %s14 = sadd.s32 1, %s10
  $region7: #{tpu_custom_call.1} parent=0 // loop_footer_branch
    %9 = sbr.rel target = $region3
  $region8: #{tpu_custom_call.1} parent=0 // loop_exit
    _

</llo_original>
